<compile_context>
chip_gen: v7x
topology: tpu7x:2x2x1
jax: 0.10.0
libtpu: 0.0.40
codegen_flags: <defaults>
</compile_context>

<pallas_src>
import numpy as np
import jax
import jax.numpy as jnp
from jax.experimental import pallas as pl
from jax.experimental.pallas import tpu as pltpu


def _learnable_sig_kernel(bounds_ref,              # SMEM [G+1] i32 (scalar prefetch)
                          x_ref,                   # VMEM [R, 128] f32 (node tile, flat-interleaved)
                          xcore_ref, w1_ref, b1_ref, w2_ref, b2_ref,   # VMEM-resident l1 params
                          o_ref):                  # VMEM [R, 128] f32
    # ---- tiny per-graph MLP:  s = relu(xcore @ w1 + b1) @ w2_lane + b2_lane ----
    # w2_lane / b2_lane are lane-interleaved host-side so this directly emits a
    # [G, 128] row of (s0, s1, s0, s1, ...) per graph.  Recomputed per step (cheap,
    # hidden under DMA; keeps the grid axis dependency-free -> "parallel").
    h = jnp.dot(xcore_ref[...], w1_ref[...],
                preferred_element_type=jnp.float32) + b1_ref[...]          # [G, F]
    h = jnp.maximum(h, 0.0)
    s_lane = jnp.dot(h, w2_ref[...],
                     preferred_element_type=jnp.float32) + b2_ref[...]     # [G, 128]

    R = x_ref.shape[0]
    G = s_lane.shape[0]

    # Flat element index of every lane in this tile (element f <-> node f//2, feat f%2).
    t0 = pl.program_id(0) * (R * 128)
    fidx = (t0
            + jax.lax.broadcasted_iota(jnp.int32, (R, 128), 0) * 128
            + jax.lax.broadcasted_iota(jnp.int32, (R, 128), 1))            # [R, 128] i32

    # Piecewise-constant per-graph shift over the sorted flat node axis:
    # G-1 compare/selects on the VPU, boundaries read from SMEM.
    shift = jnp.broadcast_to(s_lane[0:1, :], (R, 128))
    for g in range(1, G):                       # static unroll (fine for small/medium G)
        shift = jnp.where(fidx >= bounds_ref[g], s_lane[g:g + 1, :], shift)

    o_ref[...] = jax.nn.sigmoid(x_ref[...] - shift)


def learnable_sig_forward(x, xcore, batch, w1, b1, w2, b2, *, tile_rows=1024):
    """Forward pass of learnable_sig (branched).

    x:     [N, 2] f32 node features.
    xcore: [G, F] f32 per-graph core features (G = num graphs, F = fsize).
    batch: [N] int graph id per node, SORTED ascending, ids in [0, G).
    l1 params stored as y = v @ w + b (i.e. torch weights pre-transposed):
      w1:[F,F], b1:[1,F], w2:[F,2], b2:[1,2].
    Returns [N, 2] f32 = sigmoid(x - l1(xcore)[batch]).
    """
    assert x.ndim == 2 and x.shape[1] == 2
    assert tile_rows % 8 == 0
    N = x.shape[0]
    G, F = xcore.shape

    # Per-graph boundaries in flat-element units (batch sorted ascending).
    starts = jnp.searchsorted(batch.astype(jnp.int32),
                              jnp.arange(G, dtype=jnp.int32))              # [G] node starts
    bounds = jnp.concatenate([(2 * starts).astype(jnp.int32),
                              jnp.array([2 * N], dtype=jnp.int32)])        # [G+1] flat starts

    # Lane-interleave the second linear layer so the kernel emits [G, 128] directly.
    w2_lane = jnp.tile(w2.astype(jnp.float32), (1, 64))                    # [F, 128]
    b2_lane = jnp.tile(b2.astype(jnp.float32), (1, 64))                    # [1, 128]

    # Flat, lane/sublane-dense node layout: [N,2] -> [2N] -> [M,128].
    flat = x.astype(jnp.float32).reshape(-1)
    two_n = flat.shape[0]
    pad = (-two_n) % 128
    if pad:  # only when 2N % 128 != 0: pad by < 128 elements (never to a full tile)
        flat = jnp.pad(flat, (0, pad))
    x2d = flat.reshape(-1, 128)
    M = x2d.shape[0]

    R = min(tile_rows, M)            # multiple of 8, or the full row extent
    grid = (pl.cdiv(M, R),)          # ragged last block handled by Pallas masking

    out2d = pl.pallas_call(
        _learnable_sig_kernel,
        out_shape=jax.ShapeDtypeStruct((M, 128), jnp.float32),
        grid_spec=pltpu.PrefetchScalarGridSpec(
            num_scalar_prefetch=1,          # `bounds` -> SMEM
            grid=grid,
            in_specs=[
                pl.BlockSpec((R, 128), lambda i, b: (i, 0)),   # x tile (lane+sublane dense)
                pl.BlockSpec((G, F),   lambda i, b: (0, 0)),   # xcore   (VMEM-resident)
                pl.BlockSpec((F, F),   lambda i, b: (0, 0)),   # w1      (VMEM-resident)
                pl.BlockSpec((1, F),   lambda i, b: (0, 0)),   # b1      (VMEM-resident)
                pl.BlockSpec((F, 128), lambda i, b: (0, 0)),   # w2_lane (VMEM-resident)
                pl.BlockSpec((1, 128), lambda i, b: (0, 0)),   # b2_lane (VMEM-resident)
            ],
            out_specs=pl.BlockSpec((R, 128), lambda i, b: (i, 0)),
        ),
        # No cross-step state -> safe to mark parallel (v7x megacore sharding).
        # For tile_rows >= 4096 on v5e, also raise vmem_limit_bytes here.
        compiler_params=pltpu.CompilerParams(dimension_semantics=("parallel",)),
    )(bounds, x2d, xcore.astype(jnp.float32), w1.astype(jnp.float32),
      b1.astype(jnp.float32), w2_lane, b2_lane)

    if pad:
        return out2d.reshape(-1)[:two_n].reshape(N, 2)
    return out2d.reshape(N, 2)       # metadata-only when 2N % 128 == 0


if __name__ == "__main__":
    key = jax.random.PRNGKey(0)
    fsize = 32
    ks = jax.random.split(key, 8)

    # l1 = [Linear(F,F), ReLU, Linear(F,2)] stored as y = v @ W + b (torch W pre-transposed).
    w1 = 0.1 * jax.random.normal(ks[0], (fsize, fsize), jnp.float32)
    b1 = 0.1 * jax.random.normal(ks[1], (1, fsize), jnp.float32)
    w2 = 0.1 * jax.random.normal(ks[2], (fsize, 2), jnp.float32)
    b2 = 0.1 * jax.random.normal(ks[3], (1, 2), jnp.float32)
    # NOTE: l2 / alpha / beta / gamma exist in __init__ but are unused in forward.

    def reference(x, xcore, batch):
        hp = jax.lax.Precision.HIGHEST
        h = jnp.maximum(jnp.dot(xcore, w1, precision=hp) + b1, 0.0)
        s = jnp.dot(h, w2, precision=hp) + b2
        return jax.nn.sigmoid(x - s[batch])

    fwd = jax.jit(learnable_sig_forward, static_argnames=("tile_rows",))

    # --- test 1: 2N % 128 == 0 (zero-copy reshape path), multi-step grid,
    #             uneven graph sizes with boundaries inside rows and tiles ---------
    counts1 = np.array([600, 137, 1, 500, 810])          # sum = 2048 nodes, G = 5
    G1, N1 = len(counts1), int(counts1.sum())
    x1 = jax.random.normal(ks[4], (N1, 2), jnp.float32)
    xcore1 = jax.random.normal(ks[5], (G1, fsize), jnp.float32)
    batch1 = jnp.asarray(np.repeat(np.arange(G1), counts1), jnp.int32)   # sorted
    out1 = jax.block_until_ready(fwd(x1, xcore1, batch1, w1, b1, w2, b2, tile_rows=8))
    ref1 = reference(x1, xcore1, batch1)
    assert out1.shape == (N1, 2)
    assert jnp.allclose(out1, ref1, atol=2e-5, rtol=1e-4), "mismatch vs reference (test 1)"

    # --- test 2: ragged 2N (pad-to-128 + slice-back path), single block ----------
    counts2 = np.array([100, 47, 153])                   # sum = 300 nodes, G = 3
    G2, N2 = len(counts2), int(counts2.sum())
    x2 = jax.random.normal(ks[6], (N2, 2), jnp.float32)
    xcore2 = jax.random.normal(ks[7], (G2, fsize), jnp.float32)
    batch2 = jnp.asarray(np.repeat(np.arange(G2), counts2), jnp.int32)   # sorted
    out2 = jax.block_until_ready(fwd(x2, xcore2, batch2, w1, b1, w2, b2))
    ref2 = reference(x2, xcore2, batch2)
    assert out2.shape == (N2, 2)
    assert jnp.allclose(out2, ref2, atol=2e-5, rtol=1e-4), "mismatch vs reference (test 2)"

    print("KERNEL_OK")
</pallas_src>

<mosaic_0001>
module attributes {stable_mosaic.version = 11 : i64} {
  func.func @_learnable_sig_kernel(%arg0: i32, %arg1: memref<6xi32, #tpu.memory_space<smem>>, %arg2: memref<8x128xf32, #tpu.memory_space<vmem>>, %arg3: memref<5x32xf32, #tpu.memory_space<vmem>>, %arg4: memref<32x32xf32, #tpu.memory_space<vmem>>, %arg5: memref<1x32xf32, #tpu.memory_space<vmem>>, %arg6: memref<32x128xf32, #tpu.memory_space<vmem>>, %arg7: memref<1x128xf32, #tpu.memory_space<vmem>>, %arg8: memref<8x128xf32, #tpu.memory_space<vmem>>) attributes {dimension_semantics = [#tpu.dimension_semantics<parallel>], iteration_bounds = array<i64: 4>, scalar_prefetch = 1 : i64, scratch_operands = 0 : i64, tpu.core_type = #tpu.core_type<tc>, window_params = [{transform_indices = @transform_0, window_bounds = array<i64: 8, 128>}, {pipeline_mode = #tpu.pipeline_mode<synchronous>, transform_indices = @transform_1, window_bounds = array<i64: 5, 32>}, {pipeline_mode = #tpu.pipeline_mode<synchronous>, transform_indices = @transform_2, window_bounds = array<i64: 32, 32>}, {pipeline_mode = #tpu.pipeline_mode<synchronous>, transform_indices = @transform_3, window_bounds = array<i64: 1, 32>}, {pipeline_mode = #tpu.pipeline_mode<synchronous>, transform_indices = @transform_4, window_bounds = array<i64: 32, 128>}, {pipeline_mode = #tpu.pipeline_mode<synchronous>, transform_indices = @transform_5, window_bounds = array<i64: 1, 128>}, {transform_indices = @transform_6, window_bounds = array<i64: 8, 128>}]} {
    %c0 = arith.constant 0 : index
    %c0_0 = arith.constant 0 : index
    %0 = vector.load %arg3[%c0, %c0_0] : memref<5x32xf32, #tpu.memory_space<vmem>>, vector<5x32xf32>
    %c0_1 = arith.constant 0 : index
    %c0_2 = arith.constant 0 : index
    %1 = vector.load %arg4[%c0_1, %c0_2] : memref<32x32xf32, #tpu.memory_space<vmem>>, vector<32x32xf32>
    %cst = arith.constant dense<0.000000e+00> : vector<5x32xf32>
    %2 = tpu.matmul %0, %1, %cst {dimension_numbers = #tpu.dot_dimension_numbers<[1], [0], [0], [1], [0, 0, 1, 1], [], []>} : vector<5x32xf32>, vector<32x32xf32>, vector<5x32xf32> -> vector<5x32xf32>
    %c0_3 = arith.constant 0 : index
    %c0_4 = arith.constant 0 : index
    %3 = vector.load %arg5[%c0_3, %c0_4] : memref<1x32xf32, #tpu.memory_space<vmem>>, vector<1x32xf32>
    %4 = vector.broadcast %3 : vector<1x32xf32> to vector<5x32xf32>
    %5 = arith.addf %2, %4 : vector<5x32xf32>
    %cst_5 = arith.constant 0.000000e+00 : f32
    %6 = vector.broadcast %cst_5 : f32 to vector<5x32xf32>
    %7 = arith.maximumf %5, %6 : vector<5x32xf32>
    %c0_6 = arith.constant 0 : index
    %c0_7 = arith.constant 0 : index
    %8 = vector.load %arg6[%c0_6, %c0_7] : memref<32x128xf32, #tpu.memory_space<vmem>>, vector<32x128xf32>
    %cst_8 = arith.constant dense<0.000000e+00> : vector<5x128xf32>
    %9 = tpu.matmul %7, %8, %cst_8 {dimension_numbers = #tpu.dot_dimension_numbers<[1], [0], [0], [1], [0, 0, 1, 1], [], []>} : vector<5x32xf32>, vector<32x128xf32>, vector<5x128xf32> -> vector<5x128xf32>
    %c0_9 = arith.constant 0 : index
    %c0_10 = arith.constant 0 : index
    %10 = vector.load %arg7[%c0_9, %c0_10] : memref<1x128xf32, #tpu.memory_space<vmem>>, vector<1x128xf32>
    %11 = vector.broadcast %10 : vector<1x128xf32> to vector<5x128xf32>
    %12 = arith.addf %9, %11 : vector<5x128xf32>
    %c1024_i32 = arith.constant 1024 : i32
    %13 = arith.muli %arg0, %c1024_i32 : i32
    %14 = tpu.iota {dimensions = array<i32: 0>} : vector<8x128xi32>
    %c128_i32 = arith.constant 128 : i32
    %15 = vector.broadcast %c128_i32 : i32 to vector<8x128xi32>
    %16 = arith.muli %14, %15 : vector<8x128xi32>
    %17 = vector.broadcast %13 : i32 to vector<8x128xi32>
    %18 = arith.addi %17, %16 : vector<8x128xi32>
    %19 = tpu.iota {dimensions = array<i32: 1>} : vector<8x128xi32>
    %20 = arith.addi %18, %19 : vector<8x128xi32>
    %21 = vector.extract_strided_slice %12 {offsets = [0, 0], sizes = [1, 128], strides = [1, 1]} : vector<5x128xf32> to vector<1x128xf32>
    %22 = vector.shape_cast %21 : vector<1x128xf32> to vector<1x128xf32>
    %23 = vector.broadcast %22 : vector<1x128xf32> to vector<8x128xf32>
    %c1 = arith.constant 1 : index
    %24 = memref.load %arg1[%c1] : memref<6xi32, #tpu.memory_space<smem>>
    %25 = vector.broadcast %24 : i32 to vector<8x128xi32>
    %26 = arith.cmpi sge, %20, %25 : vector<8x128xi32>
    %27 = vector.extract_strided_slice %12 {offsets = [1, 0], sizes = [1, 128], strides = [1, 1]} : vector<5x128xf32> to vector<1x128xf32>
    %28 = vector.shape_cast %27 : vector<1x128xf32> to vector<1x128xf32>
    %29 = vector.broadcast %28 : vector<1x128xf32> to vector<8x128xf32>
    %30 = arith.select %26, %29, %23 : vector<8x128xi1>, vector<8x128xf32>
    %c2 = arith.constant 2 : index
    %31 = memref.load %arg1[%c2] : memref<6xi32, #tpu.memory_space<smem>>
    %32 = vector.broadcast %31 : i32 to vector<8x128xi32>
    %33 = arith.cmpi sge, %20, %32 : vector<8x128xi32>
    %34 = vector.extract_strided_slice %12 {offsets = [2, 0], sizes = [1, 128], strides = [1, 1]} : vector<5x128xf32> to vector<1x128xf32>
    %35 = vector.shape_cast %34 : vector<1x128xf32> to vector<1x128xf32>
    %36 = vector.broadcast %35 : vector<1x128xf32> to vector<8x128xf32>
    %37 = arith.select %33, %36, %30 : vector<8x128xi1>, vector<8x128xf32>
    %c3 = arith.constant 3 : index
    %38 = memref.load %arg1[%c3] : memref<6xi32, #tpu.memory_space<smem>>
    %39 = vector.broadcast %38 : i32 to vector<8x128xi32>
    %40 = arith.cmpi sge, %20, %39 : vector<8x128xi32>
    %41 = vector.extract_strided_slice %12 {offsets = [3, 0], sizes = [1, 128], strides = [1, 1]} : vector<5x128xf32> to vector<1x128xf32>
    %42 = vector.shape_cast %41 : vector<1x128xf32> to vector<1x128xf32>
    %43 = vector.broadcast %42 : vector<1x128xf32> to vector<8x128xf32>
    %44 = arith.select %40, %43, %37 : vector<8x128xi1>, vector<8x128xf32>
    %c4 = arith.constant 4 : index
    %45 = memref.load %arg1[%c4] : memref<6xi32, #tpu.memory_space<smem>>
    %46 = vector.broadcast %45 : i32 to vector<8x128xi32>
    %47 = arith.cmpi sge, %20, %46 : vector<8x128xi32>
    %48 = vector.extract_strided_slice %12 {offsets = [4, 0], sizes = [1, 128], strides = [1, 1]} : vector<5x128xf32> to vector<1x128xf32>
    %49 = vector.shape_cast %48 : vector<1x128xf32> to vector<1x128xf32>
    %50 = vector.broadcast %49 : vector<1x128xf32> to vector<8x128xf32>
    %51 = arith.select %47, %50, %44 : vector<8x128xi1>, vector<8x128xf32>
    %c0_11 = arith.constant 0 : index
    %c0_12 = arith.constant 0 : index
    %52 = vector.load %arg2[%c0_11, %c0_12] : memref<8x128xf32, #tpu.memory_space<vmem>>, vector<8x128xf32>
    %53 = arith.subf %52, %51 : vector<8x128xf32>
    %54 = arith.negf %53 : vector<8x128xf32>
    %55 = math.exp %54 : vector<8x128xf32>
    %cst_13 = arith.constant 1.000000e+00 : f32
    %56 = vector.broadcast %cst_13 : f32 to vector<8x128xf32>
    %57 = arith.addf %56, %55 : vector<8x128xf32>
    %58 = arith.divf %56, %57 : vector<8x128xf32>
    %c0_14 = arith.constant 0 : index
    %c0_15 = arith.constant 0 : index
    %59 = vector.load %arg8[%c0_14, %c0_15] : memref<8x128xf32, #tpu.memory_space<vmem>>, vector<8x128xf32>
    tpu.vector_store %arg8[%c0_14, %c0_15], %58 {strides = array<i32>} : memref<8x128xf32, #tpu.memory_space<vmem>>, vector<8x128xf32>,
    return
  }
  func.func @transform_0(%arg0: i32, %arg1: memref<6xi32, #tpu.memory_space<smem>>) -> (i32, i32) {
    %c0_i32 = arith.constant 0 : i32
    %c0_i32_0 = arith.constant 0 : i32
    return %arg0, %c0_i32 : i32, i32
  }
  func.func @transform_1(%arg0: i32, %arg1: memref<6xi32, #tpu.memory_space<smem>>) -> (i32, i32) {
    %c0_i32 = arith.constant 0 : i32
    %c0_i32_0 = arith.constant 0 : i32
    %c0_i32_1 = arith.constant 0 : i32
    return %c0_i32, %c0_i32_0 : i32, i32
  }
  func.func @transform_2(%arg0: i32, %arg1: memref<6xi32, #tpu.memory_space<smem>>) -> (i32, i32) {
    %c0_i32 = arith.constant 0 : i32
    %c0_i32_0 = arith.constant 0 : i32
    %c0_i32_1 = arith.constant 0 : i32
    return %c0_i32, %c0_i32_0 : i32, i32
  }
  func.func @transform_3(%arg0: i32, %arg1: memref<6xi32, #tpu.memory_space<smem>>) -> (i32, i32) {
    %c0_i32 = arith.constant 0 : i32
    %c0_i32_0 = arith.constant 0 : i32
    %c0_i32_1 = arith.constant 0 : i32
    return %c0_i32, %c0_i32_0 : i32, i32
  }
  func.func @transform_4(%arg0: i32, %arg1: memref<6xi32, #tpu.memory_space<smem>>) -> (i32, i32) {
    %c0_i32 = arith.constant 0 : i32
    %c0_i32_0 = arith.constant 0 : i32
    %c0_i32_1 = arith.constant 0 : i32
    return %c0_i32, %c0_i32_0 : i32, i32
  }
  func.func @transform_5(%arg0: i32, %arg1: memref<6xi32, #tpu.memory_space<smem>>) -> (i32, i32) {
    %c0_i32 = arith.constant 0 : i32
    %c0_i32_0 = arith.constant 0 : i32
    %c0_i32_1 = arith.constant 0 : i32
    return %c0_i32, %c0_i32_0 : i32, i32
  }
  func.func @transform_6(%arg0: i32, %arg1: memref<6xi32, #tpu.memory_space<smem>>) -> (i32, i32) {
    %c0_i32 = arith.constant 0 : i32
    %c0_i32_0 = arith.constant 0 : i32
    return %arg0, %c0_i32 : i32, i32
  }
}

</mosaic_0001>

<llo_original>
// kernel: custom-call
$region0: #{custom-call}
  %s0 = inlined_call_operand.vmem [shape: u32[5], index: 0, kind: output, shape index: {}]

// kernel: learnable_sig_forward.1
$region0: #{learnable_sig_forward.1}
  #allocation0 [shape = 'u32[]', space=smem, size = 0x4, offset = 0x4, fixed_abs, tag = 'smem constant byte address 0x4 - core index']
  #allocation1 [shape = 'u32[144,128]{1,0:T(1,128)}', space=vmem, size = 0x12000, scoped, tag = 'internal scratch']
  #allocation2 [shape = 's32[1]{0}', space=sflag, size = 0x4, scoped, tag = 'scoped memory for learnable_sig_forward.1']
  #allocation3 [shape = 'u8[512]{0}', space=smem, size = 0x200, scoped, tag = 'prefetched SMEM operand 0']
  %s0 = inlined_call_operand.vmem [shape: s32[6], index: 0, kind: input, shape index: {}]
  %s1 = inlined_call_operand.vmem [shape: f32[32,128], index: 1, kind: input, shape index: {}]
  %s2 = inlined_call_operand.vmem [shape: f32[5,32], index: 2, kind: input, shape index: {}]
  %s3 = inlined_call_operand.vmem [shape: f32[32,32], index: 3, kind: input, shape index: {}]
  %s4 = inlined_call_operand.vmem [shape: f32[1,32], index: 4, kind: input, shape index: {}]
  %s5 = inlined_call_operand.vmem [shape: f32[32,128], index: 5, kind: input, shape index: {}]
  %s6 = inlined_call_operand.vmem [shape: f32[1,128], index: 6, kind: input, shape index: {}]
  %s7 = inlined_call_operand.vmem [shape: f32[32,128], index: 7, kind: output, shape index: {}]
  %s8 = sld [smem:[#allocation0]]
  $region57: #{learnable_sig_forward.1} parent=0
    _
  %s10 = ssub.s32 1, %s8
  %s11 = scalar_select 0, %s10, %s8
  %s12 = sshll.u32 %s0, 4
  %s13 = int_to_ptr.vmem [resolvable:$true] %s12
  %15 = dma.vmem_to_smem %s13, 16, [#allocation3], [#allocation2]
  %16 = dma.done [#allocation2], 16
  %17 = sfence
  loop: start=0, step=1, limit=6
  $region2: #{learnable_sig_forward.1} parent=0 // loop_pre_header
    _
  $region3: #{learnable_sig_forward.1} parent=0 // loop_header
    %s19 = sphi 0, %s23
    %p20 = scmp.ge.s32.totalorder %s19, 6
    %s29 = sphi 0, %s31
    %s32 = sphi 0, %s29
    %s33 = sphi 0, %s32
    %s49 = sphi 0, %s33
    %s53 = sphi 0, %s53
    %s55 = sphi 0, %s53
    %s56 = sphi 0, %s55
    %s70 = sphi 0, %s56
    %s74 = sphi 0, %s74
    %s76 = sphi 0, %s74
    %s77 = sphi 0, %s76
    %s91 = sphi 0, %s77
    %s95 = sphi 0, %s95
    %s97 = sphi 0, %s95
    %s98 = sphi 0, %s97
    %s112 = sphi 0, %s98
    %s116 = sphi 0, %s116
    %s118 = sphi 0, %s116
    %s119 = sphi 0, %s118
    %s133 = sphi 0, %s119
    %s137 = sphi 0, %s137
    %s139 = sphi 0, %s137
    %s140 = sphi 0, %s139
    %s154 = sphi 0, %s140
    %s160 = sphi 0, %s162
    %s163 = sphi 0, %s160
    %s164 = sphi 0, %s163
    %s180 = sphi 0, %s164
  $region4: #{learnable_sig_forward.1} parent=0 // loop_header_branch
    %22 = sbr.rel (%p20) target = $region8
  $region5: #{learnable_sig_forward.1} parent=0 // loop_body
    %s24 = ssub.s32 %s19, 1
    %s25 = ssub.s32 %s19, 2
    %s26 = sadd.s32 %s19, 1
    %s27 = ssub.s32 %s19, %s26
    %p28 = scmp.eq.s32.totalorder %s27, 0
    %s30 = sadd.s32 %s29, 1
    %s31 = scalar_select %p28, %s29, %s30
    %p34 = pneg %p28
    %p35 = scmp.eq.s32.totalorder %s19, 3
    %p36 = por %p34, %p35
    %p37 = scmp.ne.s32.totalorder %s29, %s32
    %p38 = scmp.eq.s32.totalorder %s19, 0
    %p39 = por %p37, %p38
    %p40 = scmp.ne.s32.totalorder %s29, %s32
    %p41 = scmp.eq.s32.totalorder %s24, 3
    %p42 = por %p40, %p41
    %p43 = scmp.ne.s32.totalorder %s32, %s33
    %p44 = scmp.eq.s32.totalorder %s24, 0
    %p45 = por %p43, %p44
    %p46 = scmp.ne.s32.totalorder %s32, %s33
    %p47 = scmp.eq.s32.totalorder %s25, 3
    %p48 = por %p46, %p47
    %p50 = scmp.ne.s32.totalorder %s33, %s49
    %p51 = scmp.eq.s32.totalorder %s25, 0
    %p52 = por %p50, %p51
    %s54 = sadd.s32 %s53, 1
    %p57 = scmp.eq.s32.totalorder %s19, 3
    %p58 = scmp.ne.s32.totalorder %s53, %s55
    %p59 = scmp.eq.s32.totalorder %s19, 0
    %p60 = por %p58, %p59
    %p61 = scmp.ne.s32.totalorder %s53, %s55
    %p62 = scmp.eq.s32.totalorder %s24, 3
    %p63 = por %p61, %p62
    %p64 = scmp.ne.s32.totalorder %s55, %s56
    %p65 = scmp.eq.s32.totalorder %s24, 0
    %p66 = por %p64, %p65
    %p67 = scmp.ne.s32.totalorder %s55, %s56
    %p68 = scmp.eq.s32.totalorder %s25, 3
    %p69 = por %p67, %p68
    %p71 = scmp.ne.s32.totalorder %s56, %s70
    %p72 = scmp.eq.s32.totalorder %s25, 0
    %p73 = por %p71, %p72
    %s75 = sadd.s32 %s74, 1
    %p78 = scmp.eq.s32.totalorder %s19, 3
    %p79 = scmp.ne.s32.totalorder %s74, %s76
    %p80 = scmp.eq.s32.totalorder %s19, 0
    %p81 = por %p79, %p80
    %p82 = scmp.ne.s32.totalorder %s74, %s76
    %p83 = scmp.eq.s32.totalorder %s24, 3
    %p84 = por %p82, %p83
    %p85 = scmp.ne.s32.totalorder %s76, %s77
    %p86 = scmp.eq.s32.totalorder %s24, 0
    %p87 = por %p85, %p86
    %p88 = scmp.ne.s32.totalorder %s76, %s77
    %p89 = scmp.eq.s32.totalorder %s25, 3
    %p90 = por %p88, %p89
    %p92 = scmp.ne.s32.totalorder %s77, %s91
    %p93 = scmp.eq.s32.totalorder %s25, 0
    %p94 = por %p92, %p93
    %s96 = sadd.s32 %s95, 1
    %p99 = scmp.eq.s32.totalorder %s19, 3
    %p100 = scmp.ne.s32.totalorder %s95, %s97
    %p101 = scmp.eq.s32.totalorder %s19, 0
    %p102 = por %p100, %p101
    %p103 = scmp.ne.s32.totalorder %s95, %s97
    %p104 = scmp.eq.s32.totalorder %s24, 3
    %p105 = por %p103, %p104
    %p106 = scmp.ne.s32.totalorder %s97, %s98
    %p107 = scmp.eq.s32.totalorder %s24, 0
    %p108 = por %p106, %p107
    %p109 = scmp.ne.s32.totalorder %s97, %s98
    %p110 = scmp.eq.s32.totalorder %s25, 3
    %p111 = por %p109, %p110
    %p113 = scmp.ne.s32.totalorder %s98, %s112
    %p114 = scmp.eq.s32.totalorder %s25, 0
    %p115 = por %p113, %p114
    %s117 = sadd.s32 %s116, 1
    %p120 = scmp.eq.s32.totalorder %s19, 3
    %p121 = scmp.ne.s32.totalorder %s116, %s118
    %p122 = scmp.eq.s32.totalorder %s19, 0
    %p123 = por %p121, %p122
    %p124 = scmp.ne.s32.totalorder %s116, %s118
    %p125 = scmp.eq.s32.totalorder %s24, 3
    %p126 = por %p124, %p125
    %p127 = scmp.ne.s32.totalorder %s118, %s119
    %p128 = scmp.eq.s32.totalorder %s24, 0
    %p129 = por %p127, %p128
    %p130 = scmp.ne.s32.totalorder %s118, %s119
    %p131 = scmp.eq.s32.totalorder %s25, 3
    %p132 = por %p130, %p131
    %p134 = scmp.ne.s32.totalorder %s119, %s133
    %p135 = scmp.eq.s32.totalorder %s25, 0
    %p136 = por %p134, %p135
    %s138 = sadd.s32 %s137, 1
    %p141 = scmp.eq.s32.totalorder %s19, 3
    %p142 = scmp.ne.s32.totalorder %s137, %s139
    %p143 = scmp.eq.s32.totalorder %s19, 0
    %p144 = por %p142, %p143
    %p145 = scmp.ne.s32.totalorder %s137, %s139
    %p146 = scmp.eq.s32.totalorder %s24, 3
    %p147 = por %p145, %p146
    %p148 = scmp.ne.s32.totalorder %s139, %s140
    %p149 = scmp.eq.s32.totalorder %s24, 0
    %p150 = por %p148, %p149
    %p151 = scmp.ne.s32.totalorder %s139, %s140
    %p152 = scmp.eq.s32.totalorder %s25, 3
    %p153 = por %p151, %p152
    %p155 = scmp.ne.s32.totalorder %s140, %s154
    %p156 = scmp.eq.s32.totalorder %s25, 0
    %p157 = por %p155, %p156
    %s158 = ssub.s32 %s19, %s26
    %p159 = scmp.eq.s32.totalorder %s158, 0
    %s161 = sadd.s32 %s160, 1
    %s162 = scalar_select %p159, %s160, %s161
    %p165 = pneg %p159
    %p166 = scmp.eq.s32.totalorder %s19, 3
    %p167 = por %p165, %p166
    %p168 = scmp.ne.s32.totalorder %s160, %s163
    %p169 = scmp.eq.s32.totalorder %s19, 0
    %p170 = por %p168, %p169
    %p171 = scmp.ne.s32.totalorder %s160, %s163
    %p172 = scmp.eq.s32.totalorder %s24, 3
    %p173 = por %p171, %p172
    %p174 = scmp.ne.s32.totalorder %s163, %s164
    %p175 = scmp.eq.s32.totalorder %s24, 0
    %p176 = por %p174, %p175
    %p177 = scmp.ne.s32.totalorder %s163, %s164
    %p178 = scmp.eq.s32.totalorder %s25, 3
    %p179 = por %p177, %p178
    %p181 = scmp.ne.s32.totalorder %s164, %s180
    %p182 = scmp.eq.s32.totalorder %s25, 0
    %p183 = por %p181, %p182
    %p184 = scmp.le.s32.totalorder 1, %s19
    %p185 = scmp.lt.s32.totalorder %s19, 5
    %p186 = pnand %p184, %p185
    %p187 = pneg %p186
    // Predicated region
    $region9: #{learnable_sig_forward.1} parent=5 // pred_check
      _
    $region10: #{learnable_sig_forward.1} parent=5 // pred_check_branch
      %189 = sbr.rel (%p186) target = $region12
    $region11: #{learnable_sig_forward.1} parent=5 // pred_region
      %s190 = ssub.s32 %s19, 1
      // Predicated region
      $region13: #{learnable_sig_forward.1} parent=11 // pred_check
        %p191 = pneg %p66
      $region14: #{learnable_sig_forward.1} parent=11 // pred_check_branch
        %193 = sbr.rel (%p191) target = $region16
      $region15: #{learnable_sig_forward.1} parent=11 // pred_region
        _
      $region16: #{learnable_sig_forward.1} parent=11 // pred_fallthru
        _
      // Predicated region
      $region17: #{learnable_sig_forward.1} parent=11 // pred_check
        %p194 = pneg %p87
      $region18: #{learnable_sig_forward.1} parent=11 // pred_check_branch
        %196 = sbr.rel (%p194) target = $region20
      $region19: #{learnable_sig_forward.1} parent=11 // pred_region
        _
      $region20: #{learnable_sig_forward.1} parent=11 // pred_fallthru
        _
      // Predicated region
      $region21: #{learnable_sig_forward.1} parent=11 // pred_check
        %p197 = pneg %p108
      $region22: #{learnable_sig_forward.1} parent=11 // pred_check_branch
        %199 = sbr.rel (%p197) target = $region24
      $region23: #{learnable_sig_forward.1} parent=11 // pred_region
        _
      $region24: #{learnable_sig_forward.1} parent=11 // pred_fallthru
        _
      // Predicated region
      $region25: #{learnable_sig_forward.1} parent=11 // pred_check
        %p200 = pneg %p129
      $region26: #{learnable_sig_forward.1} parent=11 // pred_check_branch
        %202 = sbr.rel (%p200) target = $region28
      $region27: #{learnable_sig_forward.1} parent=11 // pred_region
        _
      $region28: #{learnable_sig_forward.1} parent=11 // pred_fallthru
        _
      // Predicated region
      $region29: #{learnable_sig_forward.1} parent=11 // pred_check
        %p203 = pneg %p150
      $region30: #{learnable_sig_forward.1} parent=11 // pred_check_branch
        %205 = sbr.rel (%p203) target = $region32
      $region31: #{learnable_sig_forward.1} parent=11 // pred_region
        _
      $region32: #{learnable_sig_forward.1} parent=11 // pred_fallthru
        _
    $region12: #{learnable_sig_forward.1} parent=5 // pred_fallthru
      _
    %p206 = scmp.lt.s32.totalorder %s19, 4
    // Predicated region
    $region33: #{learnable_sig_forward.1} parent=5 // pred_check
      %p207 = pneg %p206
    $region34: #{learnable_sig_forward.1} parent=5 // pred_check_branch
      %209 = sbr.rel (%p207) target = $region36
    $region35: #{learnable_sig_forward.1} parent=5 // pred_region
      // Predicated region
      $region37: #{learnable_sig_forward.1} parent=35 // pred_check
        %p210 = pneg %p39
      $region38: #{learnable_sig_forward.1} parent=35 // pred_check_branch
        %212 = sbr.rel (%p210) target = $region40
      $region39: #{learnable_sig_forward.1} parent=35 // pred_region
        %p213 = scmp.lt.s32.totalorder %s19, 3
        %s214 = scalar_select %p213, %s19, 3
        %s215 = smul.addr %s214, 8
        %s216 = scalar_lea.vmem %s1, %s215
      $region40: #{learnable_sig_forward.1} parent=35 // pred_fallthru
        _
    $region36: #{learnable_sig_forward.1} parent=5 // pred_fallthru
      _
    %p217 = scmp.le.s32.totalorder 1, %s19
    %p218 = scmp.lt.s32.totalorder %s19, 5
    %p219 = pnand %p217, %p218
    %p220 = pneg %p219
    // Predicated region
    $region41: #{learnable_sig_forward.1} parent=5 // pred_check
      _
    $region42: #{learnable_sig_forward.1} parent=5 // pred_check_branch
      %222 = sbr.rel (%p219) target = $region44
    $region43: #{learnable_sig_forward.1} parent=5 // pred_region
      %s223 = ssub.s32 %s19, 1
      %p224 = scmp.lt.s32.totalorder %s24, 3
      %s225 = scalar_select %p224, %s24, 3
      %s226 = smul.addr %s225, 8
      %s227 = scalar_lea.vmem %s1, %s226
      %p228 = pneg %p45
      %p229 = pneg %p42
      %p230 = pneg %p66
      %p231 = pneg %p63
      %p232 = pneg %p87
      %p233 = pneg %p84
      %p234 = pneg %p108
      %p235 = pneg %p105
      %p236 = pneg %p129
      %p237 = pneg %p126
      %p238 = pneg %p150
      %p239 = pneg %p147
      %p240 = pneg %p176
      %p241 = pneg %p173
      %p242 = scmp.lt.s32.totalorder %s24, 3
      %s243 = scalar_select %p242, %s24, 3
      %s244 = smul.addr %s243, 8
      %s245 = scalar_lea.vmem %s7, %s244
      %p246 = scmp.lt.s32.totalorder %s24, 3
      %s247 = scalar_select %p246, %s24, 3
      %s248 = smul.addr %s247, 8
      %s249 = scalar_lea.vmem %s1, %s248
      %p250 = scmp.lt.s32.totalorder %s24, 3
      %s251 = scalar_select %p250, %s24, 3
      %s252 = smul.addr %s251, 8
      %s253 = scalar_lea.vmem %s7, %s252
      %v254 = vld [vmem:[%s2] sm:$0x1f]
      %v255 = vld [vmem:[%s3] sm:$0xff]
      %v256 = vld [vmem:[%s3 + $0x8] sm:$0xff]
      %v257 = vld [vmem:[%s3 + $0x10] sm:$0xff]
      %v258 = vld [vmem:[%s3 + $0x18] sm:$0xff]
      %v259 = vld [vmem:[%s4] sm:$0x1]
      %v261 = vlaneseq
      %v262 = vshrl.u32 %v261, 7
      %v263 = vsub.s32 0, %v262
      %v264 = vrot.slane %v259, %v263
      %vm266 = vcmask 261120
      %v268 = vsel %vm266, %v254, 0
      %270 = vmatprep.subr.mxu0 0.0
      %271 = vmatpush1.msra.mxu0 %v255
      %272 = vmatprep.subr.mxu0 0.0
      %273 = vmatpush1.msra.mxu0 %v256
      %274 = vmatprep.subr.mxu0 0.0
      %275 = vmatpush1.msra.mxu0 %v257
      %276 = vmatprep.subr.mxu0 0.0
      %277 = vmatpush1.msra.mxu0 %v258
      %278 = vmatprep.subr.mxu0 0.0
      %279 = vmatpush1.msra.mxu0 0.0
      %280 = vmatprep.subr.mxu0 0.0
      %281 = vmatpush1.msra.mxu0 0.0
      %282 = vmatprep.subr.mxu0 0.0
      %283 = vmatpush1.msra.mxu0 0.0
      %284 = vmatprep.subr.mxu0 0.0
      %285 = vmatpush1.msra.mxu0 0.0
      %286 = vmatprep.subr.mxu0 0.0
      %287 = vmatpush1.msra.mxu0 0.0
      %288 = vmatprep.subr.mxu0 0.0
      %289 = vmatpush1.msra.mxu0 0.0
      %290 = vmatprep.subr.mxu0 0.0
      %291 = vmatpush1.msra.mxu0 0.0
      %292 = vmatprep.subr.mxu0 0.0
      %293 = vmatpush1.msra.mxu0 0.0
      %294 = vmatprep.subr.mxu0 0.0
      %295 = vmatpush1.msra.mxu0 0.0
      %296 = vmatprep.subr.mxu0 0.0
      %297 = vmatpush1.msra.mxu0 0.0
      %298 = vmatprep.subr.mxu0 0.0
      %299 = vmatpush1.msra.mxu0 0.0
      %300 = vmatprep.subr.mxu0 0.0
      %301 = vmatpush1.msra.mxu0 0.0
      %302 = vmatprep.subr.mxu0 0.0
      %303 = vmatpush1.msra.mxu0 0.0
      %304 = vmatprep.subr.mxu0 0.0
      %305 = vmatpush1.msra.mxu0 0.0
      %306 = vmatprep.subr.mxu0 0.0
      %307 = vmatpush1.msra.mxu0 0.0
      %308 = vmatprep.subr.mxu0 0.0
      %309 = vmatpush1.msra.mxu0 0.0
      %310 = vmatprep.subr.mxu0 0.0
      %311 = vmatpush1.msra.mxu0 0.0
      %312 = vmatprep.subr.mxu0 0.0
      %313 = vmatpush1.msra.mxu0 0.0
      %314 = vmatprep.subr.mxu0 0.0
      %315 = vmatpush1.msra.mxu0 0.0
      %316 = vmatprep.subr.mxu0 0.0
      %317 = vmatpush1.msra.mxu0 0.0
      %318 = vmatprep.subr.mxu0 0.0
      %319 = vmatpush1.msra.mxu0 0.0
      %320 = vmatprep.subr.mxu0 0.0
      %321 = vmatpush1.msra.mxu0 0.0
      %322 = vmatprep.subr.mxu0 0.0
      %323 = vmatpush1.msra.mxu0 0.0
      %324 = vmatprep.subr.mxu0 0.0
      %325 = vmatpush1.msra.mxu0 0.0
      %326 = vmatprep.subr.mxu0 0.0
      %327 = vmatpush1.msra.mxu0 0.0
      %328 = vmatprep.subr.mxu0 0.0
      %329 = vmatpush1.msra.mxu0 0.0
      %330 = vmatprep.subr.mxu0 0.0
      %331 = vmatpush1.msra.mxu0 0.0
      %332 = vmatprep.subr.mxu0 0.0
      %333 = vmatpush1.msra.mxu0 0.0
      %334 = vmatprep.mubr.f32.mxu0 0.0
      %335 = vmatmul.mubr.f32.gmra.mrb[0].mxu0 %v268
      %v336 = vpop.f32.mrb[0].mxu0
      %v337 = vadd.f32 %v264, %v336
      %v338 = vpop.f32.mrb[0].mxu0
      %339 = vdwg.mxu0
      %v340 = vmax.f32 %v337, 0.0
      %v341 = vld [vmem:[%s5] sm:$0xff]
      %v342 = vld [vmem:[%s5 + $0x8] sm:$0xff]
      %v343 = vld [vmem:[%s5 + $0x10] sm:$0xff]
      %v344 = vld [vmem:[%s5 + $0x18] sm:$0xff]
      %v345 = vld [vmem:[%s6] sm:$0x1]
      %v347 = vlaneseq
      %v348 = vshrl.u32 %v347, 7
      %v349 = vsub.s32 0, %v348
      %v350 = vrot.slane %v345, %v349
      %v353 = vsel %vm266, %v340, 0
      %355 = vmatprep.subr.mxu0 0.0
      %356 = vmatpush1.msra.mxu0 %v341
      %357 = vmatprep.subr.mxu0 0.0
      %358 = vmatpush1.msra.mxu0 %v342
      %359 = vmatprep.subr.mxu0 0.0
      %360 = vmatpush1.msra.mxu0 %v343
      %361 = vmatprep.subr.mxu0 0.0
      %362 = vmatpush1.msra.mxu0 %v344
      %363 = vmatprep.subr.mxu0 0.0
      %364 = vmatpush1.msra.mxu0 0.0
      %365 = vmatprep.subr.mxu0 0.0
      %366 = vmatpush1.msra.mxu0 0.0
      %367 = vmatprep.subr.mxu0 0.0
      %368 = vmatpush1.msra.mxu0 0.0
      %369 = vmatprep.subr.mxu0 0.0
      %370 = vmatpush1.msra.mxu0 0.0
      %371 = vmatprep.subr.mxu0 0.0
      %372 = vmatpush1.msra.mxu0 0.0
      %373 = vmatprep.subr.mxu0 0.0
      %374 = vmatpush1.msra.mxu0 0.0
      %375 = vmatprep.subr.mxu0 0.0
      %376 = vmatpush1.msra.mxu0 0.0
      %377 = vmatprep.subr.mxu0 0.0
      %378 = vmatpush1.msra.mxu0 0.0
      %379 = vmatprep.subr.mxu0 0.0
      %380 = vmatpush1.msra.mxu0 0.0
      %381 = vmatprep.subr.mxu0 0.0
      %382 = vmatpush1.msra.mxu0 0.0
      %383 = vmatprep.subr.mxu0 0.0
      %384 = vmatpush1.msra.mxu0 0.0
      %385 = vmatprep.subr.mxu0 0.0
      %386 = vmatpush1.msra.mxu0 0.0
      %387 = vmatprep.subr.mxu0 0.0
      %388 = vmatpush1.msra.mxu0 0.0
      %389 = vmatprep.subr.mxu0 0.0
      %390 = vmatpush1.msra.mxu0 0.0
      %391 = vmatprep.subr.mxu0 0.0
      %392 = vmatpush1.msra.mxu0 0.0
      %393 = vmatprep.subr.mxu0 0.0
      %394 = vmatpush1.msra.mxu0 0.0
      %395 = vmatprep.subr.mxu0 0.0
      %396 = vmatpush1.msra.mxu0 0.0
      %397 = vmatprep.subr.mxu0 0.0
      %398 = vmatpush1.msra.mxu0 0.0
      %399 = vmatprep.subr.mxu0 0.0
      %400 = vmatpush1.msra.mxu0 0.0
      %401 = vmatprep.subr.mxu0 0.0
      %402 = vmatpush1.msra.mxu0 0.0
      %403 = vmatprep.subr.mxu0 0.0
      %404 = vmatpush1.msra.mxu0 0.0
      %405 = vmatprep.subr.mxu0 0.0
      %406 = vmatpush1.msra.mxu0 0.0
      %407 = vmatprep.subr.mxu0 0.0
      %408 = vmatpush1.msra.mxu0 0.0
      %409 = vmatprep.subr.mxu0 0.0
      %410 = vmatpush1.msra.mxu0 0.0
      %411 = vmatprep.subr.mxu0 0.0
      %412 = vmatpush1.msra.mxu0 0.0
      %413 = vmatprep.subr.mxu0 0.0
      %414 = vmatpush1.msra.mxu0 0.0
      %415 = vmatprep.subr.mxu0 0.0
      %416 = vmatpush1.msra.mxu0 0.0
      %417 = vmatprep.subr.mxu0 0.0
      %418 = vmatpush1.msra.mxu0 0.0
      %419 = vmatprep.mubr.f32.mxu0 0.0
      %420 = vmatmul.mubr.f32.gmra.mrb[0].mxu0 %v353
      %v421 = vpop.f32.mrb[0].mxu0
      %v422 = vadd.f32 %v350, %v421
      %v423 = vpop.f32.mrb[0].mxu0
      %424 = vdwg.mxu0
      %s425 = smul.u32 %s24, 1024
      %v426 = vlaneseq
      %v427 = vshrl.u32 %v426, 7
      %v428 = vmul.u32 %v427, 128
      %v429 = vstv %s425
      %v430 = vadd.s32 %v429, %v428
      %v431 = vlaneseq
      %v432 = vand.u32 %v431, 127
      %v433 = vadd.s32 %v430, %v432
      %v434 = vlaneseq
      %v435 = vshrl.u32 %v434, 7
      %v436 = vsub.s32 0, %v435
      %v437 = vrot.slane %v422, %v436
      %s438 = sld [smem:[#allocation3 + $0x1]]
      %v439 = vstv %s438
      %vm440 = vcmp.ge.s32.totalorder %v433, %v439
      %v441 = vlaneseq
      %v442 = vshrl.u32 %v441, 7
      %v443 = vsub.s32 1, %v442
      %v444 = vrot.slane %v422, %v443
      %v445 = vsel %vm440, %v444, %v437
      %s446 = sld [smem:[#allocation3 + $0x2]]
      %v447 = vstv %s446
      %vm448 = vcmp.ge.s32.totalorder %v433, %v447
      %v449 = vlaneseq
      %v450 = vshrl.u32 %v449, 7
      %v451 = vsub.s32 2, %v450
      %v452 = vrot.slane %v422, %v451
      %v453 = vsel %vm448, %v452, %v445
      %s454 = sld [smem:[#allocation3 + $0x3]]
      %v455 = vstv %s454
      %vm456 = vcmp.ge.s32.totalorder %v433, %v455
      %v457 = vlaneseq
      %v458 = vshrl.u32 %v457, 7
      %v459 = vsub.s32 3, %v458
      %v460 = vrot.slane %v422, %v459
      %v461 = vsel %vm456, %v460, %v453
      %s462 = sld [smem:[#allocation3 + $0x4]]
      %v463 = vstv %s462
      %vm464 = vcmp.ge.s32.totalorder %v433, %v463
      %v465 = vlaneseq
      %v466 = vshrl.u32 %v465, 7
      %v467 = vsub.s32 4, %v466
      %v468 = vrot.slane %v422, %v467
      %v469 = vsel %vm464, %v468, %v461
      %v470 = vld [vmem:[%s249] sm:$0xff]
      %v471 = vsub.f32 %v470, %v469
      %v472 = vxor.u32 %v471, 2147483648
      %v473 = vmul.f32 %v472, 1.442695
      %v474 = vpow.pop %v473
      %v475 = vadd.f32 %v474, 1.0
      %v476 = vrcp.pop %v475
      %v477 = vmul.f32 1.0, %v476
      %478 = vst [vmem:[%s253] sm:$0xff] %v477
      %p479 = scmp.lt.s32.totalorder %s24, 3
      %s480 = scalar_select %p479, %s24, 3
      %s481 = smul.addr %s480, 8
      %s482 = scalar_lea.vmem %s7, %s481
      // Predicated region
      $region45: #{learnable_sig_forward.1} parent=43 // pred_check
        %p483 = pneg %p173
      $region46: #{learnable_sig_forward.1} parent=43 // pred_check_branch
        %485 = sbr.rel (%p483) target = $region48
      $region47: #{learnable_sig_forward.1} parent=43 // pred_region
        _
      $region48: #{learnable_sig_forward.1} parent=43 // pred_fallthru
        _
    $region44: #{learnable_sig_forward.1} parent=5 // pred_fallthru
      _
    %p486 = scmp.le.s32.totalorder 2, %s19
    // Predicated region
    $region49: #{learnable_sig_forward.1} parent=5 // pred_check
      %p487 = pneg %p486
    $region50: #{learnable_sig_forward.1} parent=5 // pred_check_branch
      %489 = sbr.rel (%p487) target = $region52
    $region51: #{learnable_sig_forward.1} parent=5 // pred_region
      %s490 = ssub.s32 %s19, 2
      // Predicated region
      $region53: #{learnable_sig_forward.1} parent=51 // pred_check
        %p491 = pneg %p179
      $region54: #{learnable_sig_forward.1} parent=51 // pred_check_branch
        %493 = sbr.rel (%p491) target = $region56
      $region55: #{learnable_sig_forward.1} parent=51 // pred_region
        %p494 = scmp.lt.s32.totalorder %s25, 3
        %s495 = scalar_select %p494, %s25, 3
        %s496 = smul.addr %s495, 8
        %s497 = scalar_lea.vmem %s7, %s496
      $region56: #{learnable_sig_forward.1} parent=51 // pred_fallthru
        _
    $region52: #{learnable_sig_forward.1} parent=5 // pred_fallthru
      _
  $region6: #{learnable_sig_forward.1} parent=0 // loop_footer
    %s23 = sadd.s32 1, %s19
  $region7: #{learnable_sig_forward.1} parent=0 // loop_footer_branch
    %18 = sbr.rel target = $region3
  $region8: #{learnable_sig_forward.1} parent=0 // loop_exit
    _

</llo_original>
